<compile_context>
chip_gen: v7x
topology: tpu7x:2x2x1
jax: 0.10.0
libtpu: 0.0.40
codegen_flags: <defaults>
</compile_context>

<pallas_src>
import functools

import jax
import jax.numpy as jnp
from jax import lax
from jax.experimental import pallas as pl
from jax.experimental.pallas import tpu as pltpu

TEMPERATURE = 0.07  # matches ContrastiveLoss.__init__ default


# ---------------------------------------------------------------------------
# Prologue: row L2-normalization (scale folded in), cast to the MXU dtype.
# ---------------------------------------------------------------------------
def _normalize_kernel(x_ref, o_ref, *, scale):
    x = x_ref[...].astype(jnp.float32)                    # (Tn, D)
    # F.normalize(x, dim=1) == x * rsqrt(max(sum(x^2), eps^2))
    inv = lax.rsqrt(jnp.maximum(jnp.sum(x * x, axis=1, keepdims=True),
                                jnp.float32(1e-24)))
    o_ref[...] = (x * (inv * jnp.float32(scale))).astype(o_ref.dtype)


def _normalize_rows(x, *, scale, out_dtype, row_tile):
    B, D = x.shape
    return pl.pallas_call(
        functools.partial(_normalize_kernel, scale=scale),
        out_shape=jax.ShapeDtypeStruct((B, D), out_dtype),
        grid_spec=pltpu.PrefetchScalarGridSpec(
            num_scalar_prefetch=0,
            grid=(B // row_tile,),
            in_specs=[pl.BlockSpec((row_tile, D), lambda i: (i, 0))],
            out_specs=pl.BlockSpec((row_tile, D), lambda i: (i, 0)),
        ),
        compiler_params=pltpu.CompilerParams(
            dimension_semantics=("parallel",),
            vmem_limit_bytes=32 * 1024 * 1024,
        ),
    )(x)


# ---------------------------------------------------------------------------
# Main kernel: matmul + online logsumexp over streamed key tiles.
# ---------------------------------------------------------------------------
def _contrastive_loss_kernel(a_ref, tmatch_ref, tkey_ref, partial_ref,
                             m_scr, l_scr, diag_scr):
    ki = pl.program_id(1)                 # key (text) tile -- innermost / reduction
    nk = pl.num_programs(1)

    @pl.when(ki == 0)
    def _init():
        m_scr[...] = jnp.full(m_scr.shape, -jnp.inf, dtype=jnp.float32)
        l_scr[...] = jnp.zeros(l_scr.shape, dtype=jnp.float32)
        # Correct-class logit per row: rowwise dot of the matched (audio, text)
        # pair.  1/temperature is already folded into the audio operand, so this
        # already IS the diagonal logit.  Once per query tile (cold path), O(Tq*D).
        diag_scr[...] = jnp.sum(a_ref[...].astype(jnp.float32)
                                * tmatch_ref[...].astype(jnp.float32),
                                axis=1, keepdims=True)

    # logits tile = (A_n / temp) @ T_n^T : contract D of both operands directly
    # (no explicit transpose), f32 accumulation on the MXU.
    s = lax.dot_general(a_ref[...], tkey_ref[...], (((1,), (1,)), ((), ())),
                        preferred_element_type=jnp.float32)        # (Tq, Tk)

    # Online logsumexp over the streamed key tiles.
    m_prev = m_scr[...]
    m_new = jnp.maximum(m_prev, jnp.max(s, axis=1, keepdims=True))
    # TODO(synk): an EUP-bound config on v6e/v7x could compute exp in bf16 with an
    # f32 row-sum; kept f32 so one kernel is also safe on v5e (no bf16 EUP).
    l_scr[...] = (jnp.exp(m_prev - m_new) * l_scr[...]
                  + jnp.sum(jnp.exp(s - m_new), axis=1, keepdims=True))
    m_scr[...] = m_new

    @pl.when(ki == nk - 1)
    def _finalize():
        per_row = m_scr[...] + jnp.log(l_scr[...]) - diag_scr[...]   # (Tq, 1)
        partial_ref[0, 0] = jnp.sum(per_row)        # SMEM scalar partial sum


def _pick_row_tile(b, target):
    """Largest multiple-of-8 divisor of `b` that is <= target (falls back to b)."""
    t = min(target, b)
    t -= t % 8
    while t >= 8:
        if b % t == 0:
            return t
        t -= 8
    return b


def contrastive_loss(audio_embeddings, text_embeddings, *,
                     temperature=TEMPERATURE,
                     block_q=None, block_k=None,
                     mxu_dtype=None,
                     text_buffers=2,
                     vmem_limit_bytes=None):
    """Pallas-TPU ContrastiveLoss.forward.  Inputs: (B, D) each.  Returns scalar f32.

    block_q      : audio (query) row tile.  Controls the HBM text re-stream
                   (B^2*D/block_q bytes) and the number of grid steps; default 512,
                   capped at B/2 for large B (v7x megacore keeps >= 2 query tiles).
    block_k      : text (key) row tile.  Controls the (Tq,Tk) f32 intermediates and
                   the MXU N width; default 256 (fills the 256-wide MXU on v6e/v7x,
                   still native on v5e's 128-wide MXU).
    mxu_dtype    : operand dtype fed to the MXU.  Default bf16 (full-rate MXU on all
                   generations, f32 accumulation); pass jnp.float32 for bit-fidelity
                   at ~3-4x lower matmul throughput.
    text_buffers : >2 enables deeper prefetch (pl.Buffered) on the streamed text
                   tiles if profiling shows exposed DMA.
    """
    B, D = audio_embeddings.shape
    assert text_embeddings.shape == (B, D)
    # TODO(synk): batch sizes that are not a multiple of 8 need padding or a masked tail tile.
    assert B % 8 == 0, "batch size must be a multiple of 8"

    if mxu_dtype is None:
        mxu_dtype = jnp.bfloat16
    mxu_dtype = jnp.dtype(mxu_dtype)

    if block_q is None:
        q_target = 512
        if B >= 256:
            q_target = min(q_target, B // 2)   # keep >= 2 query tiles for v7x megacore
        block_q = _pick_row_tile(B, q_target)
    if block_k is None:
        block_k = _pick_row_tile(B, 256)
    assert B % block_q == 0, "batch size must be divisible by block_q"
    assert B % block_k == 0, "batch size must be divisible by block_k"

    nq = B // block_q
    nk = B // block_k

    # Prologue: normalize once (hoisted out of the nq*nk loop); fold 1/temperature
    # into the audio operand so the main loop needs no extra elementwise scale.
    norm_tile = _pick_row_tile(B, 128)
    a_n = _normalize_rows(audio_embeddings, scale=1.0 / temperature,
                          out_dtype=mxu_dtype, row_tile=norm_tile)
    t_n = _normalize_rows(text_embeddings, scale=1.0,
                          out_dtype=mxu_dtype, row_tile=norm_tile)

    itemsize = mxu_dtype.itemsize
    if vmem_limit_bytes is None:
        # Double-buffered (Tq,D) audio + (Tq,D) matched-text + N-buffered (Tk,D)
        # text blocks, plus f32 (Tq,Tk) intermediates and (Tq,1) scratch.  Generous
        # headroom, clamped to [32 MiB, 48 MiB] so the default is safe on v7x's
        # 64 MiB VMEM (raise explicitly on 128 MiB v5e/v6e parts if desired).
        blocks = (4 * block_q * D + max(text_buffers, 2) * block_k * D) * itemsize
        work = 4 * block_q * block_k * 4 + 3 * block_q * 4
        vmem_limit_bytes = int(min(max(4 * (blocks + work), 32 << 20), 48 << 20))

    tkey_kwargs = {}
    if text_buffers > 2:
        tkey_kwargs["pipeline_mode"] = pl.Buffered(text_buffers)
    tkey_spec = pl.BlockSpec((block_k, D), lambda qi, ki: (ki, 0), **tkey_kwargs)

    cost = pl.CostEstimate(
        flops=2 * B * B * D + 8 * B * D,
        transcendentals=B * B + B * nk + 4 * B,       # exp per logit + alpha + rsqrt/log
        bytes_accessed=(B * D                          # audio (resident per query tile)
                        + B * D                        # matched text blocks
                        + nq * B * D) * itemsize       # text re-streamed per query tile
        + nq * 4,
    )

    partials = pl.pallas_call(
        _contrastive_loss_kernel,
        out_shape=jax.ShapeDtypeStruct((nq, 1), jnp.float32),
        grid_spec=pltpu.PrefetchScalarGridSpec(
            num_scalar_prefetch=0,
            grid=(nq, nk),
            in_specs=[
                pl.BlockSpec((block_q, D), lambda qi, ki: (qi, 0)),  # audio query tile
                pl.BlockSpec((block_q, D), lambda qi, ki: (qi, 0)),  # matched text rows
                tkey_spec,                                           # streamed text keys
            ],
            out_specs=pl.BlockSpec((1, 1), lambda qi, ki: (qi, 0),
                                   memory_space=pltpu.SMEM),
            scratch_shapes=[
                pltpu.VMEM((block_q, 1), jnp.float32),   # running max  m
                pltpu.VMEM((block_q, 1), jnp.float32),   # running sum  l
                pltpu.VMEM((block_q, 1), jnp.float32),   # diagonal (correct-class) logits
            ],
        ),
        compiler_params=pltpu.CompilerParams(
            # Query tiles split across TensorCores (v7x megacore); key axis is the
            # reduction -> "arbitrary", kept innermost.
            dimension_semantics=("parallel", "arbitrary"),
            vmem_limit_bytes=vmem_limit_bytes,
        ),
        cost_estimate=cost,
    )(a_n, t_n, t_n)

    # Final mean over all B rows (CrossEntropyLoss default reduction).
    return jnp.sum(partials) / jnp.float32(B)


def _reference_loss(a, t, temperature=TEMPERATURE):
    """Pure-JAX reference (matches the PyTorch module) for correctness checks."""
    a = a / jnp.maximum(jnp.linalg.norm(a, axis=1, keepdims=True), 1e-12)
    t = t / jnp.maximum(jnp.linalg.norm(t, axis=1, keepdims=True), 1e-12)
    logits = (a @ t.T) / temperature
    n = logits.shape[0]
    logp = jax.nn.log_softmax(logits, axis=1)
    return -jnp.mean(logp[jnp.arange(n), jnp.arange(n)])


if __name__ == "__main__":
    keys = jax.random.split(jax.random.PRNGKey(0), 6)

    # 1) Small batch, f32-MXU fidelity path -> tight tolerance vs the reference.
    B, D = 8, 32
    audio = jax.random.normal(keys[0], (B, D), dtype=jnp.float32)
    text = jax.random.normal(keys[1], (B, D), dtype=jnp.float32)
    loss = jax.block_until_ready(
        jax.jit(functools.partial(contrastive_loss, mxu_dtype=jnp.float32))(audio, text))
    ref = _reference_loss(audio, text)
    assert jnp.allclose(loss, ref, rtol=1e-4, atol=1e-4), (loss, ref)

    # 2) Multi-tile grid (online LSE across key tiles, diag scratch), default bf16 MXU.
    B2, D2 = 16, 32
    audio2 = jax.random.normal(keys[2], (B2, D2), dtype=jnp.float32)
    text2 = jax.random.normal(keys[3], (B2, D2), dtype=jnp.float32)
    loss2 = jax.block_until_ready(
        jax.jit(functools.partial(contrastive_loss, block_q=8, block_k=8))(audio2, text2))
    ref2 = _reference_loss(audio2, text2)
    assert jnp.allclose(loss2, ref2, rtol=5e-2, atol=5e-2), (loss2, ref2)

    # 3) Decoupled Tq != Tk path with bf16 MXU operands.
    B3, D3 = 64, 128
    audio3 = jax.random.normal(keys[4], (B3, D3), dtype=jnp.float32)
    text3 = jax.random.normal(keys[5], (B3, D3), dtype=jnp.float32)
    loss3 = jax.block_until_ready(
        jax.jit(functools.partial(contrastive_loss, block_q=16, block_k=32))(audio3, text3))
    ref3 = _reference_loss(audio3, text3)
    assert jnp.allclose(loss3, ref3, rtol=5e-2, atol=5e-2), (loss3, ref3)

    print("KERNEL_OK")
</pallas_src>

<mosaic_0001>
module attributes {stable_mosaic.version = 11 : i64} {
  func.func @_normalize_kernel(%arg0: i32, %arg1: memref<8x32xf32, #tpu.memory_space<vmem>>, %arg2: memref<8x32xf32, #tpu.memory_space<vmem>>) attributes {dimension_semantics = [#tpu.dimension_semantics<parallel>], iteration_bounds = array<i64: 1>, scalar_prefetch = 0 : i64, scratch_operands = 0 : i64, tpu.core_type = #tpu.core_type<tc>, window_params = [{transform_indices = @transform_0, window_bounds = array<i64: 8, 32>}, {transform_indices = @transform_1, window_bounds = array<i64: 8, 32>}]} {
    %c0 = arith.constant 0 : index
    %c0_0 = arith.constant 0 : index
    %0 = vector.load %arg1[%c0, %c0_0] : memref<8x32xf32, #tpu.memory_space<vmem>>, vector<8x32xf32>
    %1 = arith.mulf %0, %0 : vector<8x32xf32>
    %cst = arith.constant dense<0.000000e+00> : vector<8xf32>
    %2 = vector.multi_reduction <add>, %1, %cst [1] : vector<8x32xf32> to vector<8xf32>
    %3 = vector.shape_cast %2 : vector<8xf32> to vector<8x1xf32>
    %cst_1 = arith.constant 1.000000e-24 : f32
    %4 = vector.broadcast %cst_1 : f32 to vector<8x1xf32>
    %5 = arith.maximumf %3, %4 : vector<8x1xf32>
    %6 = math.rsqrt %5 : vector<8x1xf32>
    %cst_2 = arith.constant 14.2857141 : f32
    %7 = vector.broadcast %cst_2 : f32 to vector<8x1xf32>
    %8 = arith.mulf %6, %7 : vector<8x1xf32>
    %9 = vector.broadcast %8 : vector<8x1xf32> to vector<8x32xf32>
    %10 = arith.mulf %0, %9 : vector<8x32xf32>
    %c0_3 = arith.constant 0 : index
    %c0_4 = arith.constant 0 : index
    %11 = vector.load %arg2[%c0_3, %c0_4] : memref<8x32xf32, #tpu.memory_space<vmem>>, vector<8x32xf32>
    tpu.vector_store %arg2[%c0_3, %c0_4], %10 {strides = array<i32>} : memref<8x32xf32, #tpu.memory_space<vmem>>, vector<8x32xf32>,
    return
  }
  func.func @transform_0(%arg0: i32) -> (i32, i32) {
    %c0_i32 = arith.constant 0 : i32
    %c0_i32_0 = arith.constant 0 : i32
    return %arg0, %c0_i32 : i32, i32
  }
  func.func @transform_1(%arg0: i32) -> (i32, i32) {
    %c0_i32 = arith.constant 0 : i32
    %c0_i32_0 = arith.constant 0 : i32
    return %arg0, %c0_i32 : i32, i32
  }
}

module attributes {stable_mosaic.version = 11 : i64} {
  func.func @_normalize_kernel(%arg0: i32, %arg1: memref<8x32xf32, #tpu.memory_space<vmem>>, %arg2: memref<8x32xf32, #tpu.memory_space<vmem>>) attributes {dimension_semantics = [#tpu.dimension_semantics<parallel>], iteration_bounds = array<i64: 1>, scalar_prefetch = 0 : i64, scratch_operands = 0 : i64, tpu.core_type = #tpu.core_type<tc>, window_params = [{transform_indices = @transform_0, window_bounds = array<i64: 8, 32>}, {transform_indices = @transform_1, window_bounds = array<i64: 8, 32>}]} {
    %c0 = arith.constant 0 : index
    %c0_0 = arith.constant 0 : index
    %0 = vector.load %arg1[%c0, %c0_0] : memref<8x32xf32, #tpu.memory_space<vmem>>, vector<8x32xf32>
    %1 = arith.mulf %0, %0 : vector<8x32xf32>
    %cst = arith.constant dense<0.000000e+00> : vector<8xf32>
    %2 = vector.multi_reduction <add>, %1, %cst [1] : vector<8x32xf32> to vector<8xf32>
    %3 = vector.shape_cast %2 : vector<8xf32> to vector<8x1xf32>
    %cst_1 = arith.constant 1.000000e-24 : f32
    %4 = vector.broadcast %cst_1 : f32 to vector<8x1xf32>
    %5 = arith.maximumf %3, %4 : vector<8x1xf32>
    %6 = math.rsqrt %5 : vector<8x1xf32>
    %cst_2 = arith.constant 1.000000e+00 : f32
    %7 = vector.broadcast %cst_2 : f32 to vector<8x1xf32>
    %8 = arith.mulf %6, %7 : vector<8x1xf32>
    %9 = vector.broadcast %8 : vector<8x1xf32> to vector<8x32xf32>
    %10 = arith.mulf %0, %9 : vector<8x32xf32>
    %c0_3 = arith.constant 0 : index
    %c0_4 = arith.constant 0 : index
    %11 = vector.load %arg2[%c0_3, %c0_4] : memref<8x32xf32, #tpu.memory_space<vmem>>, vector<8x32xf32>
    tpu.vector_store %arg2[%c0_3, %c0_4], %10 {strides = array<i32>} : memref<8x32xf32, #tpu.memory_space<vmem>>, vector<8x32xf32>,
    return
  }
  func.func @transform_0(%arg0: i32) -> (i32, i32) {
    %c0_i32 = arith.constant 0 : i32
    %c0_i32_0 = arith.constant 0 : i32
    return %arg0, %c0_i32 : i32, i32
  }
  func.func @transform_1(%arg0: i32) -> (i32, i32) {
    %c0_i32 = arith.constant 0 : i32
    %c0_i32_0 = arith.constant 0 : i32
    return %arg0, %c0_i32 : i32, i32
  }
}

module attributes {stable_mosaic.version = 11 : i64} {
  func.func @_contrastive_loss_kernel(%arg0: i32, %arg1: i32, %arg2: memref<8x32xf32, #tpu.memory_space<vmem>>, %arg3: memref<8x32xf32, #tpu.memory_space<vmem>>, %arg4: memref<8x32xf32, #tpu.memory_space<vmem>>, %arg5: memref<1x1xf32, #tpu.memory_space<smem>>, %arg6: memref<8x1xf32, #tpu.memory_space<vmem>>, %arg7: memref<8x1xf32, #tpu.memory_space<vmem>>, %arg8: memref<8x1xf32, #tpu.memory_space<vmem>>) attributes {dimension_semantics = [#tpu.dimension_semantics<parallel>, #tpu.dimension_semantics<arbitrary>], iteration_bounds = array<i64: 1, 1>, scalar_prefetch = 0 : i64, scratch_operands = 3 : i64, tpu.core_type = #tpu.core_type<tc>, window_params = [{transform_indices = @transform_0, window_bounds = array<i64: 8, 32>}, {transform_indices = @transform_1, window_bounds = array<i64: 8, 32>}, {transform_indices = @transform_2, window_bounds = array<i64: 8, 32>}, {transform_indices = @transform_3, window_bounds = array<i64: 1, 1>}]} {
    %c0_i32 = arith.constant 0 : i32
    %0 = arith.cmpi eq, %arg1, %c0_i32 : i32
    %1 = arith.extui %0 : i1 to i32
    %c0_i32_0 = arith.constant 0 : i32
    %2 = arith.cmpi ne, %1, %c0_i32_0 : i32
    scf.if %2 {
      %cst_16 = arith.constant 0xFF800000 : f32
      %25 = vector.broadcast %cst_16 : f32 to vector<8x1xf32>
      %c0_17 = arith.constant 0 : index
      %c0_18 = arith.constant 0 : index
      %26 = vector.load %arg6[%c0_17, %c0_18] : memref<8x1xf32, #tpu.memory_space<vmem>>, vector<8x1xf32>
      tpu.vector_store %arg6[%c0_17, %c0_18], %25 {strides = array<i32>} : memref<8x1xf32, #tpu.memory_space<vmem>>, vector<8x1xf32>,
      %cst_19 = arith.constant 0.000000e+00 : f32
      %27 = vector.broadcast %cst_19 : f32 to vector<8x1xf32>
      %c0_20 = arith.constant 0 : index
      %c0_21 = arith.constant 0 : index
      %28 = vector.load %arg7[%c0_20, %c0_21] : memref<8x1xf32, #tpu.memory_space<vmem>>, vector<8x1xf32>
      tpu.vector_store %arg7[%c0_20, %c0_21], %27 {strides = array<i32>} : memref<8x1xf32, #tpu.memory_space<vmem>>, vector<8x1xf32>,
      %c0_22 = arith.constant 0 : index
      %c0_23 = arith.constant 0 : index
      %29 = vector.load %arg2[%c0_22, %c0_23] : memref<8x32xf32, #tpu.memory_space<vmem>>, vector<8x32xf32>
      %c0_24 = arith.constant 0 : index
      %c0_25 = arith.constant 0 : index
      %30 = vector.load %arg3[%c0_24, %c0_25] : memref<8x32xf32, #tpu.memory_space<vmem>>, vector<8x32xf32>
      %31 = arith.mulf %29, %30 : vector<8x32xf32>
      %cst_26 = arith.constant dense<0.000000e+00> : vector<8xf32>
      %32 = vector.multi_reduction <add>, %31, %cst_26 [1] : vector<8x32xf32> to vector<8xf32>
      %33 = vector.shape_cast %32 : vector<8xf32> to vector<8x1xf32>
      %c0_27 = arith.constant 0 : index
      %c0_28 = arith.constant 0 : index
      %34 = vector.load %arg8[%c0_27, %c0_28] : memref<8x1xf32, #tpu.memory_space<vmem>>, vector<8x1xf32>
      tpu.vector_store %arg8[%c0_27, %c0_28], %33 {strides = array<i32>} : memref<8x1xf32, #tpu.memory_space<vmem>>, vector<8x1xf32>,
    } else {
    }
    %c0 = arith.constant 0 : index
    %c0_1 = arith.constant 0 : index
    %3 = vector.load %arg2[%c0, %c0_1] : memref<8x32xf32, #tpu.memory_space<vmem>>, vector<8x32xf32>
    %c0_2 = arith.constant 0 : index
    %c0_3 = arith.constant 0 : index
    %4 = vector.load %arg4[%c0_2, %c0_3] : memref<8x32xf32, #tpu.memory_space<vmem>>, vector<8x32xf32>
    %cst = arith.constant dense<0.000000e+00> : vector<8x8xf32>
    %5 = tpu.matmul %3, %4, %cst {dimension_numbers = #tpu.dot_dimension_numbers<[1], [1], [0], [0], [0, 0, 1, 0], [], []>} : vector<8x32xf32>, vector<8x32xf32>, vector<8x8xf32> -> vector<8x8xf32>
    %c0_4 = arith.constant 0 : index
    %c0_5 = arith.constant 0 : index
    %6 = vector.load %arg6[%c0_4, %c0_5] : memref<8x1xf32, #tpu.memory_space<vmem>>, vector<8x1xf32>
    %cst_6 = arith.constant dense<0xFF800000> : vector<8xf32>
    %7 = vector.multi_reduction <maximumf>, %5, %cst_6 [1] : vector<8x8xf32> to vector<8xf32>
    %8 = vector.shape_cast %7 : vector<8xf32> to vector<8x1xf32>
    %9 = arith.maximumf %6, %8 : vector<8x1xf32>
    %10 = arith.subf %6, %9 : vector<8x1xf32>
    %11 = math.exp %10 : vector<8x1xf32>
    %c0_7 = arith.constant 0 : index
    %c0_8 = arith.constant 0 : index
    %12 = vector.load %arg7[%c0_7, %c0_8] : memref<8x1xf32, #tpu.memory_space<vmem>>, vector<8x1xf32>
    %13 = arith.mulf %11, %12 : vector<8x1xf32>
    %14 = vector.broadcast %9 : vector<8x1xf32> to vector<8x8xf32>
    %15 = arith.subf %5, %14 : vector<8x8xf32>
    %16 = math.exp %15 : vector<8x8xf32>
    %cst_9 = arith.constant dense<0.000000e+00> : vector<8xf32>
    %17 = vector.multi_reduction <add>, %16, %cst_9 [1] : vector<8x8xf32> to vector<8xf32>
    %18 = vector.shape_cast %17 : vector<8xf32> to vector<8x1xf32>
    %19 = arith.addf %13, %18 : vector<8x1xf32>
    %c0_10 = arith.constant 0 : index
    %c0_11 = arith.constant 0 : index
    %20 = vector.load %arg7[%c0_10, %c0_11] : memref<8x1xf32, #tpu.memory_space<vmem>>, vector<8x1xf32>
    tpu.vector_store %arg7[%c0_10, %c0_11], %19 {strides = array<i32>} : memref<8x1xf32, #tpu.memory_space<vmem>>, vector<8x1xf32>,
    %c0_12 = arith.constant 0 : index
    %c0_13 = arith.constant 0 : index
    %21 = vector.load %arg6[%c0_12, %c0_13] : memref<8x1xf32, #tpu.memory_space<vmem>>, vector<8x1xf32>
    tpu.vector_store %arg6[%c0_12, %c0_13], %9 {strides = array<i32>} : memref<8x1xf32, #tpu.memory_space<vmem>>, vector<8x1xf32>,
    %c0_i32_14 = arith.constant 0 : i32
    %22 = arith.cmpi eq, %arg1, %c0_i32_14 : i32
    %23 = arith.extui %22 : i1 to i32
    %c0_i32_15 = arith.constant 0 : i32
    %24 = arith.cmpi ne, %23, %c0_i32_15 : i32
    scf.if %24 {
      %c0_16 = arith.constant 0 : index
      %c0_17 = arith.constant 0 : index
      %25 = vector.load %arg6[%c0_16, %c0_17] : memref<8x1xf32, #tpu.memory_space<vmem>>, vector<8x1xf32>
      %c0_18 = arith.constant 0 : index
      %c0_19 = arith.constant 0 : index
      %26 = vector.load %arg7[%c0_18, %c0_19] : memref<8x1xf32, #tpu.memory_space<vmem>>, vector<8x1xf32>
      %27 = math.log %26 : vector<8x1xf32>
      %28 = arith.addf %25, %27 : vector<8x1xf32>
      %c0_20 = arith.constant 0 : index
      %c0_21 = arith.constant 0 : index
      %29 = vector.load %arg8[%c0_20, %c0_21] : memref<8x1xf32, #tpu.memory_space<vmem>>, vector<8x1xf32>
      %30 = arith.subf %28, %29 : vector<8x1xf32>
      %31 = vector.shape_cast %30 : vector<8x1xf32> to vector<1x8x1xf32>
      %cst_22 = arith.constant dense<0.000000e+00> : vector<1xf32>
      %32 = vector.multi_reduction <add>, %31, %cst_22 [1, 2] : vector<1x8x1xf32> to vector<1xf32>
      %33 = vector.shape_cast %32 : vector<1xf32> to vector<1x1x1xf32>
      %34 = vector.extract %33[0, 0, 0] : f32 from vector<1x1x1xf32>
      %c0_23 = arith.constant 0 : index
      %c0_24 = arith.constant 0 : index
      %35 = memref.load %arg5[%c0_23, %c0_24] : memref<1x1xf32, #tpu.memory_space<smem>>
      memref.store %34, %arg5[%c0_23, %c0_24] : memref<1x1xf32, #tpu.memory_space<smem>>
    } else {
    }
    return
  }
  func.func @transform_0(%arg0: i32, %arg1: i32) -> (i32, i32) {
    %c0_i32 = arith.constant 0 : i32
    %c0_i32_0 = arith.constant 0 : i32
    return %arg0, %c0_i32 : i32, i32
  }
  func.func @transform_1(%arg0: i32, %arg1: i32) -> (i32, i32) {
    %c0_i32 = arith.constant 0 : i32
    %c0_i32_0 = arith.constant 0 : i32
    return %arg0, %c0_i32 : i32, i32
  }
  func.func @transform_2(%arg0: i32, %arg1: i32) -> (i32, i32) {
    %c0_i32 = arith.constant 0 : i32
    %c0_i32_0 = arith.constant 0 : i32
    return %arg1, %c0_i32 : i32, i32
  }
  func.func @transform_3(%arg0: i32, %arg1: i32) -> (i32, i32) {
    %c0_i32 = arith.constant 0 : i32
    %c0_i32_0 = arith.constant 0 : i32
    return %arg0, %c0_i32 : i32, i32
  }
}

</mosaic_0001>

<llo_original>
// kernel: contrastive_loss.3
$region0: #{contrastive_loss.3}
  #allocation0 [shape = 'u32[]', space=smem, size = 0x4, offset = 0x4, fixed_abs, tag = 'smem constant byte address 0x4 - core index']
  #allocation1 [shape = 'u32[144,128]{1,0:T(1,128)}', space=vmem, size = 0x12000, scoped, tag = 'internal scratch']
  %s0 = inlined_call_operand.hbm [shape: f32[8,32], index: 0, kind: input, shape index: {}]
  %s1 = inlined_call_operand.vmem [shape: f32[8,32], index: 1, kind: output, shape index: {}]
  %s2 = sld [smem:[#allocation0]]
  $region18: #{contrastive_loss.3} parent=0
    _
  %s4 = ssub.s32 1, %s2
  %s5 = scalar_select 0, %s4, %s2
  $region1: #{contrastive_loss.3} parent=0
    #allocation2 [shape = 'u8[4096]{0}', space=vmem, size = 0x1000, scoped, tag = 'input window, operand 0, single buffered']
    #allocation3 [shape = 's32[1]{0}', space=sflag, size = 0x4, scoped, tag = 'scoped memory for contrastive_loss.3']
    %6 = vsyncpa [#allocation3], 0
    // Predicated region
    $region2: #{contrastive_loss.3} parent=1 // pred_check
      _
    $region3: #{contrastive_loss.3} parent=1 // pred_check_branch
      %8 = sbr.rel (0) target = $region5
    $region4: #{contrastive_loss.3} parent=1 // pred_region
      %s10 = ssub.s32 128, 128
      %11 = vsyncadd [#allocation3], %s10
      %s13 = sshll.u32 [#allocation2], 4
      %s14 = int_to_ptr.vmem [resolvable:$true] %s13
      %16 = dma.hbm_to_vmem [thread:$0]  %s0, 128, %s14, [#allocation3]
    $region5: #{contrastive_loss.3} parent=1 // pred_fallthru
      _
    // Predicated region
    $region6: #{contrastive_loss.3} parent=1 // pred_check
      _
    $region7: #{contrastive_loss.3} parent=1 // pred_check_branch
      %18 = sbr.rel (0) target = $region9
    $region8: #{contrastive_loss.3} parent=1 // pred_region
      %19 = dma.done [#allocation3], 128
    $region9: #{contrastive_loss.3} parent=1 // pred_fallthru
      _
    %v20 = vld [vmem:[#allocation2] sm:$0xff]
    %v21 = vmul.f32 %v20, %v20
    %vm22 = vcmask 261120
    %v23 = vsel %vm22, %v21, 0.0
    %24 = vadd.xlane.f32.xlu0 %v23
    %v25 = vpop.xlane.xlu0 %24
    %v26 = vmax.f32 %v25, 1e-24
    %v27 = vrsqrt.pop %v26
    %v28 = vmul.f32 %v27, 14.285714
    %v29 = vmul.f32 %v20, %v28
    %30 = vst.msk [vmem:[%s1] sm:$0xff] %vm22, %v29
    // Predicated region
    $region10: #{contrastive_loss.3} parent=1 // pred_check
      _
    $region11: #{contrastive_loss.3} parent=1 // pred_check_branch
      %32 = sbr.rel (0) target = $region13
    $region12: #{contrastive_loss.3} parent=1 // pred_region
      _
    $region13: #{contrastive_loss.3} parent=1 // pred_fallthru
      _
    // Predicated region
    $region14: #{contrastive_loss.3} parent=1 // pred_check
      _
    $region15: #{contrastive_loss.3} parent=1 // pred_check_branch
      %34 = sbr.rel (0) target = $region17
    $region16: #{contrastive_loss.3} parent=1 // pred_region
      _
    $region17: #{contrastive_loss.3} parent=1 // pred_fallthru
      _
    %35 = vsyncpa [#allocation3], 1

// kernel: contrastive_loss.4
$region0: #{contrastive_loss.4}
  #allocation0 [shape = 'u32[]', space=smem, size = 0x4, offset = 0x4, fixed_abs, tag = 'smem constant byte address 0x4 - core index']
  #allocation1 [shape = 'u32[144,128]{1,0:T(1,128)}', space=vmem, size = 0x12000, scoped, tag = 'internal scratch']
  %s0 = inlined_call_operand.vmem [shape: f32[8,32], index: 0, kind: input, shape index: {}]
  %s1 = inlined_call_operand.vmem [shape: f32[8,32], index: 1, kind: output, shape index: {}]
  %s2 = sld [smem:[#allocation0]]
  $region14: #{contrastive_loss.4} parent=0
    _
  %s4 = ssub.s32 1, %s2
  %s5 = scalar_select 0, %s4, %s2
  // Predicated region
  $region2: #{contrastive_loss.4} parent=0 // pred_check
    _
  $region3: #{contrastive_loss.4} parent=0 // pred_check_branch
    %7 = sbr.rel (0) target = $region5
  $region4: #{contrastive_loss.4} parent=0 // pred_region
    _
  $region5: #{contrastive_loss.4} parent=0 // pred_fallthru
    _
  %v8 = vld [vmem:[%s0] sm:$0xff]
  %v9 = vmul.f32 %v8, %v8
  %vm10 = vcmask 261120
  %v11 = vsel %vm10, %v9, 0.0
  %12 = vadd.xlane.f32.xlu0 %v11
  %v13 = vpop.xlane.xlu0 %12
  %v14 = vmax.f32 %v13, 1e-24
  %v15 = vrsqrt.pop %v14
  %v16 = vmul.f32 %v8, %v15
  %17 = vst.msk [vmem:[%s1] sm:$0xff] %vm10, %v16
  // Predicated region
  $region6: #{contrastive_loss.4} parent=0 // pred_check
    _
  $region7: #{contrastive_loss.4} parent=0 // pred_check_branch
    %19 = sbr.rel (0) target = $region9
  $region8: #{contrastive_loss.4} parent=0 // pred_region
    _
  $region9: #{contrastive_loss.4} parent=0 // pred_fallthru
    _
  // Predicated region
  $region10: #{contrastive_loss.4} parent=0 // pred_check
    _
  $region11: #{contrastive_loss.4} parent=0 // pred_check_branch
    %21 = sbr.rel (0) target = $region13
  $region12: #{contrastive_loss.4} parent=0 // pred_region
    _
  $region13: #{contrastive_loss.4} parent=0 // pred_fallthru
    _

// kernel: contrastive_loss.5
$region0: #{contrastive_loss.5}
  #allocation0 [shape = 'u32[]', space=smem, size = 0x4, offset = 0x4, fixed_abs, tag = 'smem constant byte address 0x4 - core index']
  #allocation1 [shape = 'u32[144,128]{1,0:T(1,128)}', space=vmem, size = 0x12000, scoped, tag = 'internal scratch']
  #allocation2 [shape = 'f32[8,1]{1,0:T(8,128)}', space=vmem, size = 0x1000, scoped, tag = 'scratch operand']
  #allocation3 [shape = 'f32[8,1]{1,0:T(8,128)}', space=vmem, size = 0x1000, scoped, tag = 'scratch operand']
  #allocation4 [shape = 'f32[8,1]{1,0:T(8,128)}', space=vmem, size = 0x1000, scoped, tag = 'scratch operand']
  %s0 = inlined_call_operand.vmem [shape: f32[8,32], index: 0, kind: input, shape index: {}]
  %s1 = inlined_call_operand.vmem [shape: f32[8,32], index: 1, kind: input, shape index: {}, may-alias: {1,2}]
  %s2 = inlined_call_operand.vmem [shape: f32[8,32], index: 2, kind: input, shape index: {}, may-alias: {1,2}]
  %s3 = inlined_call_operand.hbm [shape: f32[1,1], index: 3, kind: output, shape index: {}]
  %s4 = sld [smem:[#allocation0]]
  $region30: #{contrastive_loss.5} parent=0
    _
  %s6 = ssub.s32 1, %s4
  %s7 = scalar_select 0, %s6, %s4
  $region1: #{contrastive_loss.5} parent=0
    #allocation5 [shape = 'u8[512]{0}', space=smem, size = 0x200, scoped, tag = 'output window, operand 0, single buffered']
    #allocation6 [shape = 's32[1]{0}', space=sflag, size = 0x4, scoped, tag = 'scoped memory for contrastive_loss.5']
    %8 = vsyncpa [#allocation6], 0
    // Predicated region
    $region2: #{contrastive_loss.5} parent=1 // pred_check
      _
    $region3: #{contrastive_loss.5} parent=1 // pred_check_branch
      %10 = sbr.rel (0) target = $region5
    $region4: #{contrastive_loss.5} parent=1 // pred_region
      _
    $region5: #{contrastive_loss.5} parent=1 // pred_fallthru
      _
    // Predicated region
    $region6: #{contrastive_loss.5} parent=1 // pred_check
      _
    $region7: #{contrastive_loss.5} parent=1 // pred_check_branch
      %12 = sbr.rel (0) target = $region9
    $region8: #{contrastive_loss.5} parent=1 // pred_region
      _
    $region9: #{contrastive_loss.5} parent=1 // pred_fallthru
      _
    // Predicated region
    $region10: #{contrastive_loss.5} parent=1 // pred_check
      _
    $region11: #{contrastive_loss.5} parent=1 // pred_check_branch
      %14 = sbr.rel (0) target = $region13
    $region12: #{contrastive_loss.5} parent=1 // pred_region
      _
    $region13: #{contrastive_loss.5} parent=1 // pred_fallthru
      _
    %p15 = scmp.eq.s32.totalorder 0, 0
    // Predicated region
    $region14: #{contrastive_loss.5} parent=1 // pred_check
      %p16 = pneg %p15
    $region15: #{contrastive_loss.5} parent=1 // pred_check_branch
      %18 = sbr.rel (%p16) target = $region17
    $region16: #{contrastive_loss.5} parent=1 // pred_region
      %vm19 = vcmask 7168
      %20 = vst.msk [vmem:[#allocation2] sm:$0xff] %vm19, -inf
      %21 = vst.msk [vmem:[#allocation3] sm:$0xff] %vm19, 0.0
      %v22 = vld [vmem:[%s0] sm:$0xff]
      %v23 = vld [vmem:[%s1] sm:$0xff]
      %v24 = vmul.f32 %v22, %v23
      %vm25 = vcmask 261120
      %v26 = vsel %vm25, %v24, 0.0
      %27 = vadd.xlane.f32.xlu0 %v26
      %v28 = vpop.xlane.xlu0 %27
      %29 = vst.msk [vmem:[#allocation4] sm:$0xff] %vm19, %v28
    $region17: #{contrastive_loss.5} parent=1 // pred_fallthru
      _
    %v30 = vld [vmem:[%s0] sm:$0xff]
    %v31 = vld [vmem:[%s2] sm:$0xff]
    %vm32 = vcmask 261120
    %v34 = vsel %vm32, %v30, 0
    %v37 = vsel %vm32, %v31, 0
    %39 = vmatprep.subr.mxu0 0.0
    %40 = vmatpush1.xpose.msra.mxu0 %v37
    %41 = vmatprep.subr.mxu0 0.0
    %42 = vmatpush1.xpose.msra.mxu0 0.0
    %43 = vmatprep.subr.mxu0 0.0
    %44 = vmatpush1.xpose.msra.mxu0 0.0
    %45 = vmatprep.subr.mxu0 0.0
    %46 = vmatpush1.xpose.msra.mxu0 0.0
    %47 = vmatprep.subr.mxu0 0.0
    %48 = vmatpush1.xpose.msra.mxu0 0.0
    %49 = vmatprep.subr.mxu0 0.0
    %50 = vmatpush1.xpose.msra.mxu0 0.0
    %51 = vmatprep.subr.mxu0 0.0
    %52 = vmatpush1.xpose.msra.mxu0 0.0
    %53 = vmatprep.subr.mxu0 0.0
    %54 = vmatpush1.xpose.msra.mxu0 0.0
    %55 = vmatprep.subr.mxu0 0.0
    %56 = vmatpush1.xpose.msra.mxu0 0.0
    %57 = vmatprep.subr.mxu0 0.0
    %58 = vmatpush1.xpose.msra.mxu0 0.0
    %59 = vmatprep.subr.mxu0 0.0
    %60 = vmatpush1.xpose.msra.mxu0 0.0
    %61 = vmatprep.subr.mxu0 0.0
    %62 = vmatpush1.xpose.msra.mxu0 0.0
    %63 = vmatprep.subr.mxu0 0.0
    %64 = vmatpush1.xpose.msra.mxu0 0.0
    %65 = vmatprep.subr.mxu0 0.0
    %66 = vmatpush1.xpose.msra.mxu0 0.0
    %67 = vmatprep.subr.mxu0 0.0
    %68 = vmatpush1.xpose.msra.mxu0 0.0
    %69 = vmatprep.subr.mxu0 0.0
    %70 = vmatpush1.xpose.msra.mxu0 0.0
    %71 = vmatprep.subr.mxu0 0.0
    %72 = vmatpush1.xpose.msra.mxu0 0.0
    %73 = vmatprep.subr.mxu0 0.0
    %74 = vmatpush1.xpose.msra.mxu0 0.0
    %75 = vmatprep.subr.mxu0 0.0
    %76 = vmatpush1.xpose.msra.mxu0 0.0
    %77 = vmatprep.subr.mxu0 0.0
    %78 = vmatpush1.xpose.msra.mxu0 0.0
    %79 = vmatprep.subr.mxu0 0.0
    %80 = vmatpush1.xpose.msra.mxu0 0.0
    %81 = vmatprep.subr.mxu0 0.0
    %82 = vmatpush1.xpose.msra.mxu0 0.0
    %83 = vmatprep.subr.mxu0 0.0
    %84 = vmatpush1.xpose.msra.mxu0 0.0
    %85 = vmatprep.subr.mxu0 0.0
    %86 = vmatpush1.xpose.msra.mxu0 0.0
    %87 = vmatprep.subr.mxu0 0.0
    %88 = vmatpush1.xpose.msra.mxu0 0.0
    %89 = vmatprep.subr.mxu0 0.0
    %90 = vmatpush1.xpose.msra.mxu0 0.0
    %91 = vmatprep.subr.mxu0 0.0
    %92 = vmatpush1.xpose.msra.mxu0 0.0
    %93 = vmatprep.subr.mxu0 0.0
    %94 = vmatpush1.xpose.msra.mxu0 0.0
    %95 = vmatprep.subr.mxu0 0.0
    %96 = vmatpush1.xpose.msra.mxu0 0.0
    %97 = vmatprep.subr.mxu0 0.0
    %98 = vmatpush1.xpose.msra.mxu0 0.0
    %99 = vmatprep.subr.mxu0 0.0
    %100 = vmatpush1.xpose.msra.mxu0 0.0
    %101 = vmatprep.subr.mxu0 0.0
    %102 = vmatpush1.xpose.msra.mxu0 0.0
    %103 = vmatprep.mubr.f32.mxu0 0.0
    %104 = vmatmul.mubr.f32.gmra.mrb[0].mxu0 %v34
    %v105 = vpop.f32.mrb[0].mxu0
    %v106 = vadd.f32 0.0, %v105
    %v107 = vpop.f32.mrb[0].mxu0
    %108 = vdwg.mxu0
    %v109 = vld [vmem:[#allocation2] sm:$0xff]
    %vm110 = vcmask 64512
    %v111 = vsel %vm110, %v106, -inf
    %112 = vmax.xlane.f32.xlu0 %v111
    %v113 = vpop.xlane.xlu0 %112
    %v114 = vmax.f32 %v109, %v113
    %v115 = vsub.f32 %v109, %v114
    %v116 = vmul.f32 %v115, 1.442695
    %v117 = vpow.pop %v116
    %v118 = vld [vmem:[#allocation3] sm:$0xff]
    %v119 = vmul.f32 %v117, %v118
    %121 = vset.pattern.permute.xlu0 0
    %122 = vperm.xlu0 %121, %v114
    %v123 = vpop.permute.xlu0 %122
    %v125 = vsub.f32 %v106, %v123
    %v126 = vmul.f32 %v125, 1.442695
    %v127 = vpow.pop %v126
    %v128 = vsel %vm110, %v127, 0.0
    %129 = vadd.xlane.f32.xlu0 %v128
    %v130 = vpop.xlane.xlu0 %129
    %v131 = vadd.f32 %v119, %v130
    %vm132 = vcmask 7168
    %133 = vst.msk [vmem:[#allocation3] sm:$0xff] %vm132, %v131
    %134 = vst.msk [vmem:[#allocation2] sm:$0xff] %vm132, %v114
    // Predicated region
    $region18: #{contrastive_loss.5} parent=1 // pred_check
      %p135 = pneg %p15
    $region19: #{contrastive_loss.5} parent=1 // pred_check_branch
      %137 = sbr.rel (%p135) target = $region21
    $region20: #{contrastive_loss.5} parent=1 // pred_region
      %v138 = vld [vmem:[#allocation2] sm:$0xff]
      %v139 = vld [vmem:[#allocation3] sm:$0xff]
      %v140 = vlog2.pop %v139
      %v141 = vmul.f32 %v140, 0.6931472
      %v142 = vadd.f32 %v138, %v141
      %v143 = vld [vmem:[#allocation4] sm:$0xff]
      %v144 = vsub.f32 %v142, %v143
      %v145 = vsel %vm132, %v144, 0.0
      %146 = vadd.xlane.f32.xlu0 %v145
      %v147 = vpop.xlane.xlu0 %146
      %v148 = vrot.slane %v147, 4
      %v149 = vadd.f32 %v147, %v148
      %v150 = vrot.slane %v149, 2
      %v151 = vadd.f32 %v149, %v150
      %v152 = vrot.slane %v151, 1
      %v153 = vadd.f32 %v151, %v152
      %s154 = vtos %v153
      %s155 = scalar_lea.smem [#allocation5], 0
      %156 = sst [smem:[%s155]] %s154
    $region21: #{contrastive_loss.5} parent=1 // pred_fallthru
      _
    // Predicated region
    $region22: #{contrastive_loss.5} parent=1 // pred_check
      _
    $region23: #{contrastive_loss.5} parent=1 // pred_check_branch
      %158 = sbr.rel (0) target = $region25
    $region24: #{contrastive_loss.5} parent=1 // pred_region
      %s160 = ssub.s32 16, 16
      %161 = vsyncadd [#allocation6], %s160
      %164 = dma.smem_to_hbm [#allocation5], 16, %s3, [#allocation6]
    $region25: #{contrastive_loss.5} parent=1 // pred_fallthru
      _
    // Predicated region
    $region26: #{contrastive_loss.5} parent=1 // pred_check
      _
    $region27: #{contrastive_loss.5} parent=1 // pred_check_branch
      %166 = sbr.rel (0) target = $region29
    $region28: #{contrastive_loss.5} parent=1 // pred_region
      %167 = dma.done [#allocation6], 16
    $region29: #{contrastive_loss.5} parent=1 // pred_fallthru
      _
    %168 = sfence
    %169 = vsyncpa [#allocation6], 1

</llo_original>
